<compile_context>
chip_gen: v6e
topology: v6e:2x2x1
jax: 0.10.0
libtpu: 0.0.40
codegen_flags: <defaults>
</compile_context>

<pallas_src>
import jax
import jax.numpy as jnp
from jax.experimental import pallas as pl
from jax.experimental.pallas import tpu as pltpu

DIMS = [42, 30, 30, 30, 30, 2]
F_IN = DIMS[0]
F_OUT = DIMS[-1]
N_LAYERS = len(DIMS) - 1        # 5
SEG = 48                        # padded per-layer feature width
PACK = 256                      # 5 * 48 = 240 -> padded to 256 lanes
CHUNK = 128                     # rows per pipeline sub-chunk
PIPE = N_LAYERS - 1             # pipeline depth in steps (chunk in at t, out at t+PIPE)
NEG_SLOPE = 0.2
MIN_GRID = 4                    # >= 2 grid steps per TensorCore on v7x


def _round_up(n, m):
    return ((n + m - 1) // m) * m


def mlp_kernel(x_ref, w_ref, b_ref, o_ref, slab_ref):
    """x_ref: (TM, 48) bf16; w_ref: (256, 256) bf16 (cyclic block superdiag);
    b_ref: (1, 256) f32; o_ref: (TM, 2) f32; slab_ref: (128, 256) bf16 scratch."""
    tm = x_ref.shape[0]
    n_chunks = tm // CHUNK

    # Zero the pipeline state: warm-up segments must be finite (a NaN anywhere
    # in the slab would poison every matmul column via NaN * 0).
    slab_ref[...] = jnp.zeros(slab_ref.shape, slab_ref.dtype)

    @pl.loop(0, n_chunks + PIPE)
    def _(t):
        # Insert the next x chunk into segment 0 (index clamped: drain steps
        # re-load the last chunk; its results are never extracted).
        src = pl.multiple_of(jnp.minimum(t, n_chunks - 1) * CHUNK, CHUNK)
        slab_ref[:, :SEG] = x_ref[pl.ds(src, CHUNK), :]

        # One matmul applies layer j+1 to segment j for all five segments and
        # deposits each result in the next layer's segment (bf16 MXU feed,
        # f32 accumulation, f32 bias add).
        z = jnp.dot(slab_ref[...], w_ref[...],
                    preferred_element_type=jnp.float32) + b_ref[...]

        # Segment 0 of z holds the final (layer-5) outputs of the chunk
        # inserted PIPE steps ago.  During warm-up (t < PIPE) the clamped
        # destination writes garbage into rows [0, CHUNK), which step t=PIPE
        # then overwrites with chunk 0's real outputs.
        dst = pl.multiple_of(jnp.maximum(t - PIPE, 0) * CHUNK, CHUNK)
        o_ref[pl.ds(dst, CHUNK), :] = z[:, :F_OUT]

        # LeakyReLU epilogue on the f32 accumulator, carry the slab as bf16.
        # Segment 0 never feeds another matmul (overwritten next step), so
        # activating it too is harmless.
        slab_ref[...] = jnp.where(z >= 0, z, NEG_SLOPE * z).astype(jnp.bfloat16)


def pack_params(params):
    """Pack the 5 (W, b) pairs into a cyclic block-superdiagonal weight slab
    (256, 256) bf16 and a bias slab (1, 256) f32: W_{l+1} at block
    (row l, col (l+1) % 5), its bias at lane segment (l+1) % 5."""
    assert N_LAYERS * SEG <= PACK
    w_slab = jnp.zeros((PACK, PACK), jnp.float32)
    b_slab = jnp.zeros((1, PACK), jnp.float32)
    for l, (w, b) in enumerate(params):
        fi, fo = w.shape
        r0 = l * SEG
        c0 = ((l + 1) % N_LAYERS) * SEG
        w_slab = w_slab.at[r0:r0 + fi, c0:c0 + fo].set(w)
        b_slab = b_slab.at[:, c0:c0 + fo].set(b.reshape(1, fo))
    return w_slab.astype(jnp.bfloat16), b_slab


def imu_gps_correction(x, w_slab, b_slab, *, tm=4096):
    """x: (B, 42) float32; w_slab/b_slab from pack_params. Returns (B, 2) f32."""
    B = x.shape[0]
    tm = max(CHUNK, _round_up(tm, CHUNK))
    # Large tiles amortize grid-step overhead, but keep >= MIN_GRID grid steps
    # so both v7x TensorCores get work and the x DMA overlaps compute.
    tm_eff = min(tm, max(CHUNK, _round_up(-(-B // MIN_GRID), CHUNK)))
    b_pad = _round_up(B, tm_eff)
    # bf16 + feature pad 42 -> 48 up front: halves input DMA bytes, no
    # in-kernel concat/zero-pad.
    xp = jnp.pad(x.astype(jnp.bfloat16), ((0, b_pad - B), (0, SEG - F_IN)))
    grid = (b_pad // tm_eff,)

    out = pl.pallas_call(
        mlp_kernel,
        out_shape=jax.ShapeDtypeStruct((b_pad, F_OUT), jnp.float32),
        grid=grid,
        in_specs=[
            pl.BlockSpec((tm_eff, SEG), lambda i: (i, 0)),
            # Constant block index -> weights/bias DMA'd once, VMEM-resident.
            pl.BlockSpec((PACK, PACK), lambda i: (0, 0)),
            pl.BlockSpec((1, PACK), lambda i: (0, 0)),
        ],
        out_specs=pl.BlockSpec((tm_eff, F_OUT), lambda i: (i, 0)),
        scratch_shapes=[pltpu.VMEM((CHUNK, PACK), jnp.bfloat16)],
        compiler_params=pltpu.CompilerParams(
            dimension_semantics=("parallel",)),
    )(xp, w_slab, b_slab)
    return out[:B]


def init_params(key):
    """W ~ U(-k, k), b ~ U(-k, k), k = 1/sqrt(fan_in) (torch.nn.Linear-style)."""
    params = []
    for li in range(N_LAYERS):
        fan_in, fan_out = DIMS[li], DIMS[li + 1]
        key, kw, kb = jax.random.split(key, 3)
        bound = 1.0 / jnp.sqrt(fan_in)
        w = jax.random.uniform(kw, (fan_in, fan_out), jnp.float32,
                               minval=-bound, maxval=bound)
        b = jax.random.uniform(kb, (1, fan_out), jnp.float32,
                               minval=-bound, maxval=bound)
        params.append((w, b))
    return params


def reference_forward(x, params):
    """Pure-JAX reference matching the kernel's numerics (bf16 MXU operands,
    f32 accumulation, f32 bias + LeakyReLU, bf16 inter-layer activations)."""
    h = x.astype(jnp.bfloat16)
    z = None
    for i, (w, b) in enumerate(params):
        z = jnp.dot(h, w.astype(jnp.bfloat16),
                    preferred_element_type=jnp.float32) + b
        if i < len(params) - 1:
            h = jnp.where(z >= 0, z, NEG_SLOPE * z).astype(jnp.bfloat16)
    return z


if __name__ == "__main__":
    key = jax.random.PRNGKey(0)
    kx, kp = jax.random.split(key)
    params = init_params(kp)
    w_slab, b_slab = pack_params(params)

    # B=300: tail padding, single-chunk tiles (grid=3).
    # B=1536: multi-chunk tiles (n_chunks=3), 4 grid steps, no padding.
    for B in (300, 1536):
        x = jax.random.normal(jax.random.fold_in(kx, B), (B, F_IN), jnp.float32)
        out = jax.block_until_ready(imu_gps_correction(x, w_slab, b_slab))
        ref = reference_forward(x, params)
        assert out.shape == (B, F_OUT), out.shape
        max_err = jnp.max(jnp.abs(out - ref))
        assert jnp.allclose(out, ref, atol=2e-3, rtol=2e-3), \
            f"B={B}: max abs err = {max_err}"

    print("KERNEL_OK")
</pallas_src>

<mosaic_0001>
module attributes {stable_mosaic.version = 11 : i64} {
  func.func @mlp_kernel(%arg0: i32, %arg1: memref<128x48xbf16, #tpu.memory_space<vmem>>, %arg2: memref<256x256xbf16, #tpu.memory_space<vmem>>, %arg3: memref<1x256xf32, #tpu.memory_space<vmem>>, %arg4: memref<128x2xf32, #tpu.memory_space<vmem>>, %arg5: memref<128x256xbf16, #tpu.memory_space<vmem>>) attributes {dimension_semantics = [#tpu.dimension_semantics<parallel>], iteration_bounds = array<i64: 3>, scalar_prefetch = 0 : i64, scratch_operands = 1 : i64, tpu.core_type = #tpu.core_type<tc>, window_params = [{transform_indices = @transform_0, window_bounds = array<i64: 128, 48>}, {pipeline_mode = #tpu.pipeline_mode<synchronous>, transform_indices = @transform_1, window_bounds = array<i64: 256, 256>}, {pipeline_mode = #tpu.pipeline_mode<synchronous>, transform_indices = @transform_2, window_bounds = array<i64: 1, 256>}, {transform_indices = @transform_3, window_bounds = array<i64: 128, 2>}]} {
    %cst = arith.constant 0.000000e+00 : bf16
    %0 = vector.broadcast %cst : bf16 to vector<128x256xbf16>
    %c0 = arith.constant 0 : index
    %c0_0 = arith.constant 0 : index
    %1 = vector.load %arg5[%c0, %c0_0] : memref<128x256xbf16, #tpu.memory_space<vmem>>, vector<128x256xbf16>
    tpu.vector_store %arg5[%c0, %c0_0], %0 {strides = array<i32>} : memref<128x256xbf16, #tpu.memory_space<vmem>>, vector<128x256xbf16>,
    %c0_i32 = arith.constant 0 : i32
    %c5_i32 = arith.constant 5 : i32
    %2 = arith.addi %c0_i32, %c5_i32 : i32
    %c1_i32 = arith.constant 1 : i32
    scf.for %arg6 = %c0_i32 to %2 step %c1_i32  : i32 {
      %c1_i32_2 = arith.constant 1 : i32
      %3 = arith.muli %arg6, %c1_i32_2 : i32
      %c0_i32_3 = arith.constant 0 : i32
      %4 = arith.addi %c0_i32_3, %3 : i32
      %c0_i32_4 = arith.constant 0 : i32
      %5 = arith.minsi %4, %c0_i32_4 : i32
      %c128_i32 = arith.constant 128 : i32
      %6 = arith.muli %5, %c128_i32 : i32
      %7 = tpu.assume_multiple %6, 128 : i32
      %8 = arith.index_cast %7 : i32 to index
      %c0_5 = arith.constant 0 : index
      %9 = vector.load %arg1[%8, %c0_5] : memref<128x48xbf16, #tpu.memory_space<vmem>>, vector<128x48xbf16>
      %c0_6 = arith.constant 0 : index
      %c0_7 = arith.constant 0 : index
      %10 = vector.load %arg5[%c0_6, %c0_7] : memref<128x256xbf16, #tpu.memory_space<vmem>>, vector<128x48xbf16>
      tpu.vector_store %arg5[%c0_6, %c0_7], %9 {strides = array<i32>} : memref<128x256xbf16, #tpu.memory_space<vmem>>, vector<128x48xbf16>,
      %c0_8 = arith.constant 0 : index
      %c0_9 = arith.constant 0 : index
      %11 = vector.load %arg5[%c0_8, %c0_9] : memref<128x256xbf16, #tpu.memory_space<vmem>>, vector<128x256xbf16>
      %c0_10 = arith.constant 0 : index
      %c0_11 = arith.constant 0 : index
      %12 = vector.load %arg2[%c0_10, %c0_11] : memref<256x256xbf16, #tpu.memory_space<vmem>>, vector<256x256xbf16>
      %cst_12 = arith.constant dense<0.000000e+00> : vector<128x256xf32>
      %13 = tpu.matmul %11, %12, %cst_12 {dimension_numbers = #tpu.dot_dimension_numbers<[1], [0], [0], [1], [0, 0, 1, 1], [], []>} : vector<128x256xbf16>, vector<256x256xbf16>, vector<128x256xf32> -> vector<128x256xf32>
      %c0_13 = arith.constant 0 : index
      %c0_14 = arith.constant 0 : index
      %14 = vector.load %arg3[%c0_13, %c0_14] : memref<1x256xf32, #tpu.memory_space<vmem>>, vector<1x256xf32>
      %15 = vector.broadcast %14 : vector<1x256xf32> to vector<128x256xf32>
      %16 = arith.addf %13, %15 : vector<128x256xf32>
      %c4_i32 = arith.constant 4 : i32
      %17 = arith.subi %4, %c4_i32 : i32
      %c0_i32_15 = arith.constant 0 : i32
      %18 = arith.maxsi %17, %c0_i32_15 : i32
      %c128_i32_16 = arith.constant 128 : i32
      %19 = arith.muli %18, %c128_i32_16 : i32
      %20 = tpu.assume_multiple %19, 128 : i32
      %21 = vector.extract_strided_slice %16 {offsets = [0, 0], sizes = [128, 2], strides = [1, 1]} : vector<128x256xf32> to vector<128x2xf32>
      %22 = arith.index_cast %20 : i32 to index
      %c0_17 = arith.constant 0 : index
      %23 = vector.load %arg4[%22, %c0_17] : memref<128x2xf32, #tpu.memory_space<vmem>>, vector<128x2xf32>
      tpu.vector_store %arg4[%22, %c0_17], %21 {strides = array<i32>} : memref<128x2xf32, #tpu.memory_space<vmem>>, vector<128x2xf32>,
      %cst_18 = arith.constant 0.000000e+00 : f32
      %24 = vector.broadcast %cst_18 : f32 to vector<128x256xf32>
      %25 = arith.cmpf oge, %16, %24 : vector<128x256xf32>
      %cst_19 = arith.constant 2.000000e-01 : f32
      %26 = vector.broadcast %cst_19 : f32 to vector<128x256xf32>
      %27 = arith.mulf %26, %16 : vector<128x256xf32>
      %28 = arith.select %25, %16, %27 : vector<128x256xi1>, vector<128x256xf32>
      %29 = arith.truncf %28 : vector<128x256xf32> to vector<128x256xbf16>
      %c0_20 = arith.constant 0 : index
      %c0_21 = arith.constant 0 : index
      %30 = vector.load %arg5[%c0_20, %c0_21] : memref<128x256xbf16, #tpu.memory_space<vmem>>, vector<128x256xbf16>
      tpu.vector_store %arg5[%c0_20, %c0_21], %29 {strides = array<i32>} : memref<128x256xbf16, #tpu.memory_space<vmem>>, vector<128x256xbf16>,
    }
    %c5_i32_1 = arith.constant 5 : i32
    return
  }
  func.func @transform_0(%arg0: i32) -> (i32, i32) {
    %c0_i32 = arith.constant 0 : i32
    %c0_i32_0 = arith.constant 0 : i32
    return %arg0, %c0_i32 : i32, i32
  }
  func.func @transform_1(%arg0: i32) -> (i32, i32) {
    %c0_i32 = arith.constant 0 : i32
    %c0_i32_0 = arith.constant 0 : i32
    %c0_i32_1 = arith.constant 0 : i32
    return %c0_i32, %c0_i32_0 : i32, i32
  }
  func.func @transform_2(%arg0: i32) -> (i32, i32) {
    %c0_i32 = arith.constant 0 : i32
    %c0_i32_0 = arith.constant 0 : i32
    %c0_i32_1 = arith.constant 0 : i32
    return %c0_i32, %c0_i32_0 : i32, i32
  }
  func.func @transform_3(%arg0: i32) -> (i32, i32) {
    %c0_i32 = arith.constant 0 : i32
    %c0_i32_0 = arith.constant 0 : i32
    return %arg0, %c0_i32 : i32, i32
  }
}

</mosaic_0001>

<llo_original>
// kernel: tpu_custom_call.1
$region0: #{tpu_custom_call.1}
  #allocation0 [shape = 'u32[]', space=smem, size = 0x4, offset = 0x4, fixed_abs, tag = 'smem constant byte address 0x4 - core index']
  #allocation1 [shape = 'u32[144,128]{1,0:T(1,128)}', space=vmem, size = 0x12000, scoped, tag = 'internal scratch']
  #allocation2 [shape = 'bf16[128,256]{1,0:T(8,128)(2,1)}', space=vmem, size = 0x10000, scoped, tag = 'scratch operand']
  %s0 = inlined_call_operand.vmem [shape: bf16[384,48], index: 0, kind: input, shape index: {}]
  %s1 = inlined_call_operand.vmem [shape: bf16[256,256], index: 1, kind: input, shape index: {}]
  %s2 = inlined_call_operand.vmem [shape: f32[1,256], index: 2, kind: input, shape index: {}]
  %s3 = inlined_call_operand.vmem [shape: f32[384,2], index: 3, kind: output, shape index: {}]
  %s4 = sld [smem:[#allocation0]]
  $region52: #{tpu_custom_call.1} parent=0
    _
  %s6 = ssub.s32 1, %s4
  %s7 = scalar_select 0, %s6, %s4
  loop: start=0, step=1, limit=5
  $region2: #{tpu_custom_call.1} parent=0 // loop_pre_header
    _
  $region3: #{tpu_custom_call.1} parent=0 // loop_header
    %s9 = sphi 0, %s13
    %p10 = scmp.ge.s32.totalorder %s9, 5
    %s19 = sphi 0, %s21
    %s22 = sphi 0, %s19
    %s23 = sphi 0, %s22
    %s39 = sphi 0, %s23
    %s43 = sphi 0, %s43
    %s45 = sphi 0, %s43
    %s46 = sphi 0, %s45
    %s60 = sphi 0, %s46
    %s64 = sphi 0, %s64
    %s66 = sphi 0, %s64
    %s67 = sphi 0, %s66
    %s81 = sphi 0, %s67
    %s87 = sphi 0, %s89
    %s90 = sphi 0, %s87
    %s91 = sphi 0, %s90
    %s107 = sphi 0, %s91
  $region4: #{tpu_custom_call.1} parent=0 // loop_header_branch
    %12 = sbr.rel (%p10) target = $region8
  $region5: #{tpu_custom_call.1} parent=0 // loop_body
    %s14 = ssub.s32 %s9, 1
    %s15 = ssub.s32 %s9, 2
    %s16 = sadd.s32 %s9, 1
    %s17 = ssub.s32 %s9, %s16
    %p18 = scmp.eq.s32.totalorder %s17, 0
    %s20 = sadd.s32 %s19, 1
    %s21 = scalar_select %p18, %s19, %s20
    %p24 = pneg %p18
    %p25 = scmp.eq.s32.totalorder %s9, 2
    %p26 = por %p24, %p25
    %p27 = scmp.ne.s32.totalorder %s19, %s22
    %p28 = scmp.eq.s32.totalorder %s9, 0
    %p29 = por %p27, %p28
    %p30 = scmp.ne.s32.totalorder %s19, %s22
    %p31 = scmp.eq.s32.totalorder %s14, 2
    %p32 = por %p30, %p31
    %p33 = scmp.ne.s32.totalorder %s22, %s23
    %p34 = scmp.eq.s32.totalorder %s14, 0
    %p35 = por %p33, %p34
    %p36 = scmp.ne.s32.totalorder %s22, %s23
    %p37 = scmp.eq.s32.totalorder %s15, 2
    %p38 = por %p36, %p37
    %p40 = scmp.ne.s32.totalorder %s23, %s39
    %p41 = scmp.eq.s32.totalorder %s15, 0
    %p42 = por %p40, %p41
    %s44 = sadd.s32 %s43, 1
    %p47 = scmp.eq.s32.totalorder %s9, 2
    %p48 = scmp.ne.s32.totalorder %s43, %s45
    %p49 = scmp.eq.s32.totalorder %s9, 0
    %p50 = por %p48, %p49
    %p51 = scmp.ne.s32.totalorder %s43, %s45
    %p52 = scmp.eq.s32.totalorder %s14, 2
    %p53 = por %p51, %p52
    %p54 = scmp.ne.s32.totalorder %s45, %s46
    %p55 = scmp.eq.s32.totalorder %s14, 0
    %p56 = por %p54, %p55
    %p57 = scmp.ne.s32.totalorder %s45, %s46
    %p58 = scmp.eq.s32.totalorder %s15, 2
    %p59 = por %p57, %p58
    %p61 = scmp.ne.s32.totalorder %s46, %s60
    %p62 = scmp.eq.s32.totalorder %s15, 0
    %p63 = por %p61, %p62
    %s65 = sadd.s32 %s64, 1
    %p68 = scmp.eq.s32.totalorder %s9, 2
    %p69 = scmp.ne.s32.totalorder %s64, %s66
    %p70 = scmp.eq.s32.totalorder %s9, 0
    %p71 = por %p69, %p70
    %p72 = scmp.ne.s32.totalorder %s64, %s66
    %p73 = scmp.eq.s32.totalorder %s14, 2
    %p74 = por %p72, %p73
    %p75 = scmp.ne.s32.totalorder %s66, %s67
    %p76 = scmp.eq.s32.totalorder %s14, 0
    %p77 = por %p75, %p76
    %p78 = scmp.ne.s32.totalorder %s66, %s67
    %p79 = scmp.eq.s32.totalorder %s15, 2
    %p80 = por %p78, %p79
    %p82 = scmp.ne.s32.totalorder %s67, %s81
    %p83 = scmp.eq.s32.totalorder %s15, 0
    %p84 = por %p82, %p83
    %s85 = ssub.s32 %s9, %s16
    %p86 = scmp.eq.s32.totalorder %s85, 0
    %s88 = sadd.s32 %s87, 1
    %s89 = scalar_select %p86, %s87, %s88
    %p92 = pneg %p86
    %p93 = scmp.eq.s32.totalorder %s9, 2
    %p94 = por %p92, %p93
    %p95 = scmp.ne.s32.totalorder %s87, %s90
    %p96 = scmp.eq.s32.totalorder %s9, 0
    %p97 = por %p95, %p96
    %p98 = scmp.ne.s32.totalorder %s87, %s90
    %p99 = scmp.eq.s32.totalorder %s14, 2
    %p100 = por %p98, %p99
    %p101 = scmp.ne.s32.totalorder %s90, %s91
    %p102 = scmp.eq.s32.totalorder %s14, 0
    %p103 = por %p101, %p102
    %p104 = scmp.ne.s32.totalorder %s90, %s91
    %p105 = scmp.eq.s32.totalorder %s15, 2
    %p106 = por %p104, %p105
    %p108 = scmp.ne.s32.totalorder %s91, %s107
    %p109 = scmp.eq.s32.totalorder %s15, 0
    %p110 = por %p108, %p109
    %p111 = scmp.le.s32.totalorder 1, %s9
    %p112 = scmp.lt.s32.totalorder %s9, 4
    %p113 = pnand %p111, %p112
    %p114 = pneg %p113
    // Predicated region
    $region9: #{tpu_custom_call.1} parent=5 // pred_check
      _
    $region10: #{tpu_custom_call.1} parent=5 // pred_check_branch
      %116 = sbr.rel (%p113) target = $region12
    $region11: #{tpu_custom_call.1} parent=5 // pred_region
      %s117 = ssub.s32 %s9, 1
      // Predicated region
      $region13: #{tpu_custom_call.1} parent=11 // pred_check
        %p118 = pneg %p56
      $region14: #{tpu_custom_call.1} parent=11 // pred_check_branch
        %120 = sbr.rel (%p118) target = $region16
      $region15: #{tpu_custom_call.1} parent=11 // pred_region
        _
      $region16: #{tpu_custom_call.1} parent=11 // pred_fallthru
        _
      // Predicated region
      $region17: #{tpu_custom_call.1} parent=11 // pred_check
        %p121 = pneg %p77
      $region18: #{tpu_custom_call.1} parent=11 // pred_check_branch
        %123 = sbr.rel (%p121) target = $region20
      $region19: #{tpu_custom_call.1} parent=11 // pred_region
        _
      $region20: #{tpu_custom_call.1} parent=11 // pred_fallthru
        _
    $region12: #{tpu_custom_call.1} parent=5 // pred_fallthru
      _
    %p124 = scmp.lt.s32.totalorder %s9, 3
    // Predicated region
    $region21: #{tpu_custom_call.1} parent=5 // pred_check
      %p125 = pneg %p124
    $region22: #{tpu_custom_call.1} parent=5 // pred_check_branch
      %127 = sbr.rel (%p125) target = $region24
    $region23: #{tpu_custom_call.1} parent=5 // pred_region
      // Predicated region
      $region25: #{tpu_custom_call.1} parent=23 // pred_check
        %p128 = pneg %p29
      $region26: #{tpu_custom_call.1} parent=23 // pred_check_branch
        %130 = sbr.rel (%p128) target = $region28
      $region27: #{tpu_custom_call.1} parent=23 // pred_region
        %s131 = smul.u32 16, %s9
        %p132 = scmp.lt.s32.totalorder %s131, 47
        %s133 = scalar_select %p132, %s131, 47
        %s134 = smul.addr %s133, 4
        %s135 = scalar_lea.vmem %s0, %s134
        %s136 = smul.u32 16, %s9
      $region28: #{tpu_custom_call.1} parent=23 // pred_fallthru
        _
    $region24: #{tpu_custom_call.1} parent=5 // pred_fallthru
      _
    %p137 = scmp.le.s32.totalorder 1, %s9
    %p138 = scmp.lt.s32.totalorder %s9, 4
    %p139 = pnand %p137, %p138
    %p140 = pneg %p139
    // Predicated region
    $region29: #{tpu_custom_call.1} parent=5 // pred_check
      _
    $region30: #{tpu_custom_call.1} parent=5 // pred_check_branch
      %142 = sbr.rel (%p139) target = $region32
    $region31: #{tpu_custom_call.1} parent=5 // pred_region
      %s143 = ssub.s32 %s9, 1
      %s144 = smul.u32 16, %s14
      %p145 = scmp.lt.s32.totalorder %s144, 47
      %s146 = scalar_select %p145, %s144, 47
      %s147 = smul.addr %s146, 4
      %s148 = scalar_lea.vmem %s0, %s147
      %p149 = pneg %p35
      %p150 = pneg %p32
      %p151 = pneg %p56
      %p152 = pneg %p53
      %p153 = pneg %p77
      %p154 = pneg %p74
      %p155 = pneg %p103
      %p156 = pneg %p100
      %s157 = smul.u32 16, %s14
      %p158 = scmp.lt.s32.totalorder %s157, 47
      %s159 = scalar_select %p158, %s157, 47
      %s160 = smul.addr %s159, 8
      %s161 = scalar_lea.vmem %s3, %s160
      %s162 = smul.u32 16, %s14
      %p163 = scmp.lt.s32.totalorder %s162, 47
      %s164 = scalar_select %p163, %s162, 47
      %s165 = smul.addr %s164, 4
      %s166 = scalar_lea.vmem %s0, %s165
      %s167 = smul.u32 16, %s14
      %s168 = smul.u32 16, %s14
      %p169 = scmp.lt.s32.totalorder %s168, 47
      %s170 = scalar_select %p169, %s168, 47
      %s171 = smul.addr %s170, 8
      %s172 = scalar_lea.vmem %s3, %s171
      %s173 = smul.u32 16, %s14
      %175 = vst [vmem:[#allocation2] sm:$0xff] 0
      %176 = vst [vmem:[#allocation2 + $0x8] sm:$0xff] 0
      %177 = vst [vmem:[#allocation2 + $0x10] sm:$0xff] 0
      %178 = vst [vmem:[#allocation2 + $0x18] sm:$0xff] 0
      %179 = vst [vmem:[#allocation2 + $0x20] sm:$0xff] 0
      %180 = vst [vmem:[#allocation2 + $0x28] sm:$0xff] 0
      %181 = vst [vmem:[#allocation2 + $0x30] sm:$0xff] 0
      %182 = vst [vmem:[#allocation2 + $0x38] sm:$0xff] 0
      %183 = vst [vmem:[#allocation2 + $0x40] sm:$0xff] 0
      %184 = vst [vmem:[#allocation2 + $0x48] sm:$0xff] 0
      %185 = vst [vmem:[#allocation2 + $0x50] sm:$0xff] 0
      %186 = vst [vmem:[#allocation2 + $0x58] sm:$0xff] 0
      %187 = vst [vmem:[#allocation2 + $0x60] sm:$0xff] 0
      %188 = vst [vmem:[#allocation2 + $0x68] sm:$0xff] 0
      %189 = vst [vmem:[#allocation2 + $0x70] sm:$0xff] 0
      %190 = vst [vmem:[#allocation2 + $0x78] sm:$0xff] 0
      loop: start=0, step=1, limit=5
      $region33: #{tpu_custom_call.1} parent=31 // loop_pre_header
        _
      $region34: #{tpu_custom_call.1} parent=31 // loop_header
        %s192 = sphi 0, %s196
        %p193 = scmp.ge.s32.totalorder %s192, 5
      $region35: #{tpu_custom_call.1} parent=31 // loop_header_branch
        %195 = sbr.rel (%p193) target = $region39
      $region36: #{tpu_custom_call.1} parent=31 // loop_body
        %p197 = scmp.lt.s32.totalorder %s192, 0
        %s198 = scalar_select %p197, %s192, 0
        %s199 = smul.u32 %s198, 128
        %s200 = sshra.s32 %s199, 3
        %s201 = sand.u32 %s199, 7
        %s202 = smul.addr %s200, 4
        %s203 = scalar_lea.vmem %s166, %s202
        %v204 = vld [vmem:[%s203] sm:$0xf]
        %v205 = vld [vmem:[%s203 + $0x4] sm:$0xf]
        %v206 = vld [vmem:[%s203 + $0x8] sm:$0xf]
        %v207 = vld [vmem:[%s203 + $0xc] sm:$0xf]
        %v208 = vld [vmem:[%s203 + $0x10] sm:$0xf]
        %v209 = vld [vmem:[%s203 + $0x14] sm:$0xf]
        %v210 = vld [vmem:[%s203 + $0x18] sm:$0xf]
        %v211 = vld [vmem:[%s203 + $0x1c] sm:$0xf]
        %v212 = vld [vmem:[%s203 + $0x20] sm:$0xf]
        %v213 = vld [vmem:[%s203 + $0x24] sm:$0xf]
        %v214 = vld [vmem:[%s203 + $0x28] sm:$0xf]
        %v215 = vld [vmem:[%s203 + $0x2c] sm:$0xf]
        %v216 = vld [vmem:[%s203 + $0x30] sm:$0xf]
        %v217 = vld [vmem:[%s203 + $0x34] sm:$0xf]
        %v218 = vld [vmem:[%s203 + $0x38] sm:$0xf]
        %v219 = vld [vmem:[%s203 + $0x3c] sm:$0xf]
        %vm220 = vcmask 388096
        %221 = vst.msk [vmem:[#allocation2] sm:$0xf] %vm220, %v204
        %222 = vst.msk [vmem:[#allocation2 + $0x8] sm:$0xf] %vm220, %v205
        %223 = vst.msk [vmem:[#allocation2 + $0x10] sm:$0xf] %vm220, %v206
        %224 = vst.msk [vmem:[#allocation2 + $0x18] sm:$0xf] %vm220, %v207
        %225 = vst.msk [vmem:[#allocation2 + $0x20] sm:$0xf] %vm220, %v208
        %226 = vst.msk [vmem:[#allocation2 + $0x28] sm:$0xf] %vm220, %v209
        %227 = vst.msk [vmem:[#allocation2 + $0x30] sm:$0xf] %vm220, %v210
        %228 = vst.msk [vmem:[#allocation2 + $0x38] sm:$0xf] %vm220, %v211
        %229 = vst.msk [vmem:[#allocation2 + $0x40] sm:$0xf] %vm220, %v212
        %230 = vst.msk [vmem:[#allocation2 + $0x48] sm:$0xf] %vm220, %v213
        %231 = vst.msk [vmem:[#allocation2 + $0x50] sm:$0xf] %vm220, %v214
        %232 = vst.msk [vmem:[#allocation2 + $0x58] sm:$0xf] %vm220, %v215
        %233 = vst.msk [vmem:[#allocation2 + $0x60] sm:$0xf] %vm220, %v216
        %234 = vst.msk [vmem:[#allocation2 + $0x68] sm:$0xf] %vm220, %v217
        %235 = vst.msk [vmem:[#allocation2 + $0x70] sm:$0xf] %vm220, %v218
        %236 = vst.msk [vmem:[#allocation2 + $0x78] sm:$0xf] %vm220, %v219
        %v237 = vld [vmem:[#allocation2] sm:$0xff]
        %v238 = vld [vmem:[#allocation2 + $0x8] sm:$0xff]
        %v239 = vld [vmem:[#allocation2 + $0x10] sm:$0xff]
        %v240 = vld [vmem:[#allocation2 + $0x18] sm:$0xff]
        %v241 = vld [vmem:[#allocation2 + $0x20] sm:$0xff]
        %v242 = vld [vmem:[#allocation2 + $0x28] sm:$0xff]
        %v243 = vld [vmem:[#allocation2 + $0x30] sm:$0xff]
        %v244 = vld [vmem:[#allocation2 + $0x38] sm:$0xff]
        %v245 = vld [vmem:[#allocation2 + $0x40] sm:$0xff]
        %v246 = vld [vmem:[#allocation2 + $0x48] sm:$0xff]
        %v247 = vld [vmem:[#allocation2 + $0x50] sm:$0xff]
        %v248 = vld [vmem:[#allocation2 + $0x58] sm:$0xff]
        %v249 = vld [vmem:[#allocation2 + $0x60] sm:$0xff]
        %v250 = vld [vmem:[#allocation2 + $0x68] sm:$0xff]
        %v251 = vld [vmem:[#allocation2 + $0x70] sm:$0xff]
        %v252 = vld [vmem:[#allocation2 + $0x78] sm:$0xff]
        %v253 = vld [vmem:[%s1] sm:$0xff]
        %v254 = vld [vmem:[%s1 + $0x8] sm:$0xff]
        %v255 = vld [vmem:[%s1 + $0x10] sm:$0xff]
        %v256 = vld [vmem:[%s1 + $0x18] sm:$0xff]
        %v257 = vld [vmem:[%s1 + $0x20] sm:$0xff]
        %v258 = vld [vmem:[%s1 + $0x28] sm:$0xff]
        %v259 = vld [vmem:[%s1 + $0x30] sm:$0xff]
        %v260 = vld [vmem:[%s1 + $0x38] sm:$0xff]
        %v261 = vld [vmem:[%s1 + $0x40] sm:$0xff]
        %v262 = vld [vmem:[%s1 + $0x48] sm:$0xff]
        %v263 = vld [vmem:[%s1 + $0x50] sm:$0xff]
        %v264 = vld [vmem:[%s1 + $0x58] sm:$0xff]
        %v265 = vld [vmem:[%s1 + $0x60] sm:$0xff]
        %v266 = vld [vmem:[%s1 + $0x68] sm:$0xff]
        %v267 = vld [vmem:[%s1 + $0x70] sm:$0xff]
        %v268 = vld [vmem:[%s1 + $0x78] sm:$0xff]
        %v269 = vld [vmem:[%s1 + $0x80] sm:$0xff]
        %v270 = vld [vmem:[%s1 + $0x88] sm:$0xff]
        %v271 = vld [vmem:[%s1 + $0x90] sm:$0xff]
        %v272 = vld [vmem:[%s1 + $0x98] sm:$0xff]
        %v273 = vld [vmem:[%s1 + $0xa0] sm:$0xff]
        %v274 = vld [vmem:[%s1 + $0xa8] sm:$0xff]
        %v275 = vld [vmem:[%s1 + $0xb0] sm:$0xff]
        %v276 = vld [vmem:[%s1 + $0xb8] sm:$0xff]
        %v277 = vld [vmem:[%s1 + $0xc0] sm:$0xff]
        %v278 = vld [vmem:[%s1 + $0xc8] sm:$0xff]
        %v279 = vld [vmem:[%s1 + $0xd0] sm:$0xff]
        %v280 = vld [vmem:[%s1 + $0xd8] sm:$0xff]
        %v281 = vld [vmem:[%s1 + $0xe0] sm:$0xff]
        %v282 = vld [vmem:[%s1 + $0xe8] sm:$0xff]
        %v283 = vld [vmem:[%s1 + $0xf0] sm:$0xff]
        %v284 = vld [vmem:[%s1 + $0xf8] sm:$0xff]
        %v285 = vld [vmem:[%s2] sm:$0x3]
        %v287 = vlaneseq
        %v288 = vshrl.u32 %v287, 7
        %v289 = vsub.s32 0, %v288
        %v290 = vrot.slane %v285, %v289
        %v291 = vlaneseq
        %v292 = vshrl.u32 %v291, 7
        %v293 = vsub.s32 1, %v292
        %v294 = vrot.slane %v285, %v293
        %v313 = vunpack.c.l.b16 %v237
        %v314 = vunpack.c.h.b16 %v237
        %v315 = vunpack.c.l.b16 %v238
        %v316 = vunpack.c.h.b16 %v238
        %v317 = vunpack.c.l.b16 %v239
        %v318 = vunpack.c.h.b16 %v239
        %v319 = vunpack.c.l.b16 %v240
        %v320 = vunpack.c.h.b16 %v240
        %v321 = vunpack.c.l.b16 %v241
        %v322 = vunpack.c.h.b16 %v241
        %v323 = vunpack.c.l.b16 %v242
        %v324 = vunpack.c.h.b16 %v242
        %v325 = vunpack.c.l.b16 %v243
        %v326 = vunpack.c.h.b16 %v243
        %v327 = vunpack.c.l.b16 %v244
        %v328 = vunpack.c.h.b16 %v244
        %v329 = vunpack.c.l.b16 %v245
        %v330 = vunpack.c.h.b16 %v245
        %v331 = vunpack.c.l.b16 %v246
        %v332 = vunpack.c.h.b16 %v246
        %v333 = vunpack.c.l.b16 %v247
        %v334 = vunpack.c.h.b16 %v247
        %v335 = vunpack.c.l.b16 %v248
        %v336 = vunpack.c.h.b16 %v248
        %v337 = vunpack.c.l.b16 %v249
        %v338 = vunpack.c.h.b16 %v249
        %v339 = vunpack.c.l.b16 %v250
        %v340 = vunpack.c.h.b16 %v250
        %v341 = vunpack.c.l.b16 %v251
        %v342 = vunpack.c.h.b16 %v251
        %v343 = vunpack.c.l.b16 %v252
        %v344 = vunpack.c.h.b16 %v252
        %v345 = vpack.c.b16 %v315, %v313
        %v346 = vpack.c.b16 %v316, %v314
        %v347 = vpack.c.b16 %v319, %v317
        %v348 = vpack.c.b16 %v320, %v318
        %v349 = vpack.c.b16 %v323, %v321
        %v350 = vpack.c.b16 %v324, %v322
        %v351 = vpack.c.b16 %v327, %v325
        %v352 = vpack.c.b16 %v328, %v326
        %v353 = vpack.c.b16 %v331, %v329
        %v354 = vpack.c.b16 %v332, %v330
        %v355 = vpack.c.b16 %v335, %v333
        %v356 = vpack.c.b16 %v336, %v334
        %v357 = vpack.c.b16 %v339, %v337
        %v358 = vpack.c.b16 %v340, %v338
        %v359 = vpack.c.b16 %v343, %v341
        %v360 = vpack.c.b16 %v344, %v342
        %v409 = vunpack.c.l.b16 %v253
        %v410 = vunpack.c.h.b16 %v253
        %v411 = vunpack.c.l.b16 %v254
        %v412 = vunpack.c.h.b16 %v254
        %v413 = vunpack.c.l.b16 %v255
        %v414 = vunpack.c.h.b16 %v255
        %v415 = vunpack.c.l.b16 %v256
        %v416 = vunpack.c.h.b16 %v256
        %v417 = vunpack.c.l.b16 %v257
        %v418 = vunpack.c.h.b16 %v257
        %v419 = vunpack.c.l.b16 %v258
        %v420 = vunpack.c.h.b16 %v258
        %v421 = vunpack.c.l.b16 %v259
        %v422 = vunpack.c.h.b16 %v259
        %v423 = vunpack.c.l.b16 %v260
        %v424 = vunpack.c.h.b16 %v260
        %v425 = vunpack.c.l.b16 %v261
        %v426 = vunpack.c.h.b16 %v261
        %v427 = vunpack.c.l.b16 %v262
        %v428 = vunpack.c.h.b16 %v262
        %v429 = vunpack.c.l.b16 %v263
        %v430 = vunpack.c.h.b16 %v263
        %v431 = vunpack.c.l.b16 %v264
        %v432 = vunpack.c.h.b16 %v264
        %v433 = vunpack.c.l.b16 %v265
        %v434 = vunpack.c.h.b16 %v265
        %v435 = vunpack.c.l.b16 %v266
        %v436 = vunpack.c.h.b16 %v266
        %v437 = vunpack.c.l.b16 %v267
        %v438 = vunpack.c.h.b16 %v267
        %v439 = vunpack.c.l.b16 %v268
        %v440 = vunpack.c.h.b16 %v268
        %v441 = vunpack.c.l.b16 %v269
        %v442 = vunpack.c.h.b16 %v269
        %v443 = vunpack.c.l.b16 %v270
        %v444 = vunpack.c.h.b16 %v270
        %v445 = vunpack.c.l.b16 %v271
        %v446 = vunpack.c.h.b16 %v271
        %v447 = vunpack.c.l.b16 %v272
        %v448 = vunpack.c.h.b16 %v272
        %v449 = vunpack.c.l.b16 %v273
        %v450 = vunpack.c.h.b16 %v273
        %v451 = vunpack.c.l.b16 %v274
        %v452 = vunpack.c.h.b16 %v274
        %v453 = vunpack.c.l.b16 %v275
        %v454 = vunpack.c.h.b16 %v275
        %v455 = vunpack.c.l.b16 %v276
        %v456 = vunpack.c.h.b16 %v276
        %v457 = vunpack.c.l.b16 %v277
        %v458 = vunpack.c.h.b16 %v277
        %v459 = vunpack.c.l.b16 %v278
        %v460 = vunpack.c.h.b16 %v278
        %v461 = vunpack.c.l.b16 %v279
        %v462 = vunpack.c.h.b16 %v279
        %v463 = vunpack.c.l.b16 %v280
        %v464 = vunpack.c.h.b16 %v280
        %v465 = vunpack.c.l.b16 %v281
        %v466 = vunpack.c.h.b16 %v281
        %v467 = vunpack.c.l.b16 %v282
        %v468 = vunpack.c.h.b16 %v282
        %v469 = vunpack.c.l.b16 %v283
        %v470 = vunpack.c.h.b16 %v283
        %v471 = vunpack.c.l.b16 %v284
        %v472 = vunpack.c.h.b16 %v284
        %v473 = vpack.c.b16 %v411, %v409
        %v474 = vpack.c.b16 %v412, %v410
        %v475 = vpack.c.b16 %v415, %v413
        %v476 = vpack.c.b16 %v416, %v414
        %v477 = vpack.c.b16 %v419, %v417
        %v478 = vpack.c.b16 %v420, %v418
        %v479 = vpack.c.b16 %v423, %v421
        %v480 = vpack.c.b16 %v424, %v422
        %v481 = vpack.c.b16 %v427, %v425
        %v482 = vpack.c.b16 %v428, %v426
        %v483 = vpack.c.b16 %v431, %v429
        %v484 = vpack.c.b16 %v432, %v430
        %v485 = vpack.c.b16 %v435, %v433
        %v486 = vpack.c.b16 %v436, %v434
        %v487 = vpack.c.b16 %v439, %v437
        %v488 = vpack.c.b16 %v440, %v438
        %v489 = vpack.c.b16 %v443, %v441
        %v490 = vpack.c.b16 %v444, %v442
        %v491 = vpack.c.b16 %v447, %v445
        %v492 = vpack.c.b16 %v448, %v446
        %v493 = vpack.c.b16 %v451, %v449
        %v494 = vpack.c.b16 %v452, %v450
        %v495 = vpack.c.b16 %v455, %v453
        %v496 = vpack.c.b16 %v456, %v454
        %v497 = vpack.c.b16 %v459, %v457
        %v498 = vpack.c.b16 %v460, %v458
        %v499 = vpack.c.b16 %v463, %v461
        %v500 = vpack.c.b16 %v464, %v462
        %v501 = vpack.c.b16 %v467, %v465
        %v502 = vpack.c.b16 %v468, %v466
        %v503 = vpack.c.b16 %v471, %v469
        %v504 = vpack.c.b16 %v472, %v470
        %537 = vmatprep.subr.bf16.mxu0 %v488
        %538 = vmatpush1.bf16.msra.mxu0 %v487
        %539 = vmatprep.subr.bf16.mxu0 %v486
        %540 = vmatpush1.bf16.msra.mxu0 %v485
        %541 = vmatprep.subr.bf16.mxu0 %v484
        %542 = vmatpush1.bf16.msra.mxu0 %v483
        %543 = vmatprep.subr.bf16.mxu0 %v482
        %544 = vmatpush1.bf16.msra.mxu0 %v481
        %545 = vmatprep.subr.bf16.mxu0 %v480
        %546 = vmatpush1.bf16.msra.mxu0 %v479
        %547 = vmatprep.subr.bf16.mxu0 %v478
        %548 = vmatpush1.bf16.msra.mxu0 %v477
        %549 = vmatprep.subr.bf16.mxu0 %v476
        %550 = vmatpush1.bf16.msra.mxu0 %v475
        %551 = vmatprep.subr.bf16.mxu0 %v474
        %552 = vmatpush1.bf16.msra.mxu0 %v473
        %553 = vmatprep.subr.bf16.mxu0 %v504
        %554 = vmatpush2.bf16.msra.mxu0 %v503
        %555 = vmatprep.subr.bf16.mxu0 %v502
        %556 = vmatpush2.bf16.msra.mxu0 %v501
        %557 = vmatprep.subr.bf16.mxu0 %v500
        %558 = vmatpush2.bf16.msra.mxu0 %v499
        %559 = vmatprep.subr.bf16.mxu0 %v498
        %560 = vmatpush2.bf16.msra.mxu0 %v497
        %561 = vmatprep.subr.bf16.mxu0 %v496
        %562 = vmatpush2.bf16.msra.mxu0 %v495
        %563 = vmatprep.subr.bf16.mxu0 %v494
        %564 = vmatpush2.bf16.msra.mxu0 %v493
        %565 = vmatprep.subr.bf16.mxu0 %v492
        %566 = vmatpush2.bf16.msra.mxu0 %v491
        %567 = vmatprep.subr.bf16.mxu0 %v490
        %568 = vmatpush2.bf16.msra.mxu0 %v489
        %569 = vmatprep.mubr.bf16.mxu0 %v346
        %570 = vmatmul.mubr.bf16.gmra.mxu0 %v345
        %v571 = vpop.f32.mrf.mxu0
        %v572 = vadd.f32 %v290, %v571
        %v573 = vpop.f32.mrf.mxu0
        %v574 = vadd.f32 %v294, %v573
        %v575 = vpop.f32.mrf.mxu0
        %v576 = vadd.f32 %v290, %v575
        %v577 = vpop.f32.mrf.mxu0
        %v578 = vadd.f32 %v294, %v577
        %579 = vmatprep.mubr.bf16.mxu0 %v348
        %580 = vmatmul.mubr.bf16.gmra.mxu0 %v347
        %v581 = vpop.f32.mrf.mxu0
        %v582 = vadd.f32 %v290, %v581
        %v583 = vpop.f32.mrf.mxu0
        %v584 = vadd.f32 %v294, %v583
        %v585 = vpop.f32.mrf.mxu0
        %v586 = vadd.f32 %v290, %v585
        %v587 = vpop.f32.mrf.mxu0
        %v588 = vadd.f32 %v294, %v587
        %589 = vmatprep.mubr.bf16.mxu0 %v350
        %590 = vmatmul.mubr.bf16.gmra.mxu0 %v349
        %v591 = vpop.f32.mrf.mxu0
        %v592 = vadd.f32 %v290, %v591
        %v593 = vpop.f32.mrf.mxu0
        %v594 = vadd.f32 %v294, %v593
        %v595 = vpop.f32.mrf.mxu0
        %v596 = vadd.f32 %v290, %v595
        %v597 = vpop.f32.mrf.mxu0
        %v598 = vadd.f32 %v294, %v597
        %599 = vmatprep.mubr.bf16.mxu0 %v352
        %600 = vmatmul.mubr.bf16.gmra.mxu0 %v351
        %v601 = vpop.f32.mrf.mxu0
        %v602 = vadd.f32 %v290, %v601
        %v603 = vpop.f32.mrf.mxu0
        %v604 = vadd.f32 %v294, %v603
        %v605 = vpop.f32.mrf.mxu0
        %v606 = vadd.f32 %v290, %v605
        %v607 = vpop.f32.mrf.mxu0
        %v608 = vadd.f32 %v294, %v607
        %609 = vmatprep.mubr.bf16.mxu0 %v354
        %610 = vmatmul.mubr.bf16.gmra.mxu0 %v353
        %v611 = vpop.f32.mrf.mxu0
        %v612 = vadd.f32 %v290, %v611
        %v613 = vpop.f32.mrf.mxu0
        %v614 = vadd.f32 %v294, %v613
        %v615 = vpop.f32.mrf.mxu0
        %v616 = vadd.f32 %v290, %v615
        %v617 = vpop.f32.mrf.mxu0
        %v618 = vadd.f32 %v294, %v617
        %619 = vmatprep.mubr.bf16.mxu0 %v356
        %620 = vmatmul.mubr.bf16.gmra.mxu0 %v355
        %v621 = vpop.f32.mrf.mxu0
        %v622 = vadd.f32 %v290, %v621
        %v623 = vpop.f32.mrf.mxu0
        %v624 = vadd.f32 %v294, %v623
        %v625 = vpop.f32.mrf.mxu0
        %v626 = vadd.f32 %v290, %v625
        %v627 = vpop.f32.mrf.mxu0
        %v628 = vadd.f32 %v294, %v627
        %629 = vmatprep.mubr.bf16.mxu0 %v358
        %630 = vmatmul.mubr.bf16.gmra.mxu0 %v357
        %v631 = vpop.f32.mrf.mxu0
        %v632 = vadd.f32 %v290, %v631
        %v633 = vpop.f32.mrf.mxu0
        %v634 = vadd.f32 %v294, %v633
        %v635 = vpop.f32.mrf.mxu0
        %v636 = vadd.f32 %v290, %v635
        %v637 = vpop.f32.mrf.mxu0
        %v638 = vadd.f32 %v294, %v637
        %639 = vmatprep.mubr.bf16.mxu0 %v360
        %640 = vmatmul.mubr.bf16.gmra.mxu0 %v359
        %v641 = vpop.f32.mrf.mxu0
        %v642 = vadd.f32 %v290, %v641
        %v643 = vpop.f32.mrf.mxu0
        %v644 = vadd.f32 %v294, %v643
        %v645 = vpop.f32.mrf.mxu0
        %v646 = vadd.f32 %v290, %v645
        %v647 = vpop.f32.mrf.mxu0
        %v648 = vadd.f32 %v294, %v647
        %649 = vdwg.mxu0
        %s650 = ssub.s32 %s192, 4
        %p651 = scmp.gt.s32.totalorder %s650, 0
        %s652 = scalar_select %p651, %s650, 0
        %s653 = smul.u32 %s652, 128
        %s654 = scalar_lea.vmem %s172, %s653
        %vm655 = vcmask 15360
        %656 = vst.msk [vmem:[%s654] sm:$0xff] %vm655, %v572
        %657 = vst.msk [vmem:[%s654 + $0x8] sm:$0xff] %vm655, %v576
        %658 = vst.msk [vmem:[%s654 + $0x10] sm:$0xff] %vm655, %v582
        %659 = vst.msk [vmem:[%s654 + $0x18] sm:$0xff] %vm655, %v586
        %660 = vst.msk [vmem:[%s654 + $0x20] sm:$0xff] %vm655, %v592
        %661 = vst.msk [vmem:[%s654 + $0x28] sm:$0xff] %vm655, %v596
        %662 = vst.msk [vmem:[%s654 + $0x30] sm:$0xff] %vm655, %v602
        %663 = vst.msk [vmem:[%s654 + $0x38] sm:$0xff] %vm655, %v606
        %664 = vst.msk [vmem:[%s654 + $0x40] sm:$0xff] %vm655, %v612
        %665 = vst.msk [vmem:[%s654 + $0x48] sm:$0xff] %vm655, %v616
        %666 = vst.msk [vmem:[%s654 + $0x50] sm:$0xff] %vm655, %v622
        %667 = vst.msk [vmem:[%s654 + $0x58] sm:$0xff] %vm655, %v626
        %668 = vst.msk [vmem:[%s654 + $0x60] sm:$0xff] %vm655, %v632
        %669 = vst.msk [vmem:[%s654 + $0x68] sm:$0xff] %vm655, %v636
        %670 = vst.msk [vmem:[%s654 + $0x70] sm:$0xff] %vm655, %v642
        %671 = vst.msk [vmem:[%s654 + $0x78] sm:$0xff] %vm655, %v646
        %vm672 = vcmp.ge.f32.partialorder %v572, 0.0
        %vm673 = vcmp.ge.f32.partialorder %v574, 0.0
        %vm674 = vcmp.ge.f32.partialorder %v576, 0.0
        %vm675 = vcmp.ge.f32.partialorder %v578, 0.0
        %vm676 = vcmp.ge.f32.partialorder %v582, 0.0
        %vm677 = vcmp.ge.f32.partialorder %v584, 0.0
        %vm678 = vcmp.ge.f32.partialorder %v586, 0.0
        %vm679 = vcmp.ge.f32.partialorder %v588, 0.0
        %vm680 = vcmp.ge.f32.partialorder %v592, 0.0
        %vm681 = vcmp.ge.f32.partialorder %v594, 0.0
        %vm682 = vcmp.ge.f32.partialorder %v596, 0.0
        %vm683 = vcmp.ge.f32.partialorder %v598, 0.0
        %vm684 = vcmp.ge.f32.partialorder %v602, 0.0
        %vm685 = vcmp.ge.f32.partialorder %v604, 0.0
        %vm686 = vcmp.ge.f32.partialorder %v606, 0.0
        %vm687 = vcmp.ge.f32.partialorder %v608, 0.0
        %vm688 = vcmp.ge.f32.partialorder %v612, 0.0
        %vm689 = vcmp.ge.f32.partialorder %v614, 0.0
        %vm690 = vcmp.ge.f32.partialorder %v616, 0.0
        %vm691 = vcmp.ge.f32.partialorder %v618, 0.0
        %vm692 = vcmp.ge.f32.partialorder %v622, 0.0
        %vm693 = vcmp.ge.f32.partialorder %v624, 0.0
        %vm694 = vcmp.ge.f32.partialorder %v626, 0.0
        %vm695 = vcmp.ge.f32.partialorder %v628, 0.0
        %vm696 = vcmp.ge.f32.partialorder %v632, 0.0
        %vm697 = vcmp.ge.f32.partialorder %v634, 0.0
        %vm698 = vcmp.ge.f32.partialorder %v636, 0.0
        %vm699 = vcmp.ge.f32.partialorder %v638, 0.0
        %vm700 = vcmp.ge.f32.partialorder %v642, 0.0
        %vm701 = vcmp.ge.f32.partialorder %v644, 0.0
        %vm702 = vcmp.ge.f32.partialorder %v646, 0.0
        %vm703 = vcmp.ge.f32.partialorder %v648, 0.0
        %v704 = vmul.f32 %v572, 0.2
        %v705 = vmul.f32 %v574, 0.2
        %v706 = vmul.f32 %v576, 0.2
        %v707 = vmul.f32 %v578, 0.2
        %v708 = vmul.f32 %v582, 0.2
        %v709 = vmul.f32 %v584, 0.2
        %v710 = vmul.f32 %v586, 0.2
        %v711 = vmul.f32 %v588, 0.2
        %v712 = vmul.f32 %v592, 0.2
        %v713 = vmul.f32 %v594, 0.2
        %v714 = vmul.f32 %v596, 0.2
        %v715 = vmul.f32 %v598, 0.2
        %v716 = vmul.f32 %v602, 0.2
        %v717 = vmul.f32 %v604, 0.2
        %v718 = vmul.f32 %v606, 0.2
        %v719 = vmul.f32 %v608, 0.2
        %v720 = vmul.f32 %v612, 0.2
        %v721 = vmul.f32 %v614, 0.2
        %v722 = vmul.f32 %v616, 0.2
        %v723 = vmul.f32 %v618, 0.2
        %v724 = vmul.f32 %v622, 0.2
        %v725 = vmul.f32 %v624, 0.2
        %v726 = vmul.f32 %v626, 0.2
        %v727 = vmul.f32 %v628, 0.2
        %v728 = vmul.f32 %v632, 0.2
        %v729 = vmul.f32 %v634, 0.2
        %v730 = vmul.f32 %v636, 0.2
        %v731 = vmul.f32 %v638, 0.2
        %v732 = vmul.f32 %v642, 0.2
        %v733 = vmul.f32 %v644, 0.2
        %v734 = vmul.f32 %v646, 0.2
        %v735 = vmul.f32 %v648, 0.2
        %v736 = vsel %vm672, %v572, %v704
        %v737 = vsel %vm673, %v574, %v705
        %v738 = vsel %vm674, %v576, %v706
        %v739 = vsel %vm675, %v578, %v707
        %v740 = vsel %vm676, %v582, %v708
        %v741 = vsel %vm677, %v584, %v709
        %v742 = vsel %vm678, %v586, %v710
        %v743 = vsel %vm679, %v588, %v711
        %v744 = vsel %vm680, %v592, %v712
        %v745 = vsel %vm681, %v594, %v713
        %v746 = vsel %vm682, %v596, %v714
        %v747 = vsel %vm683, %v598, %v715
        %v748 = vsel %vm684, %v602, %v716
        %v749 = vsel %vm685, %v604, %v717
        %v750 = vsel %vm686, %v606, %v718
        %v751 = vsel %vm687, %v608, %v719
        %v752 = vsel %vm688, %v612, %v720
        %v753 = vsel %vm689, %v614, %v721
        %v754 = vsel %vm690, %v616, %v722
        %v755 = vsel %vm691, %v618, %v723
        %v756 = vsel %vm692, %v622, %v724
        %v757 = vsel %vm693, %v624, %v725
        %v758 = vsel %vm694, %v626, %v726
        %v759 = vsel %vm695, %v628, %v727
        %v760 = vsel %vm696, %v632, %v728
        %v761 = vsel %vm697, %v634, %v729
        %v762 = vsel %vm698, %v636, %v730
        %v763 = vsel %vm699, %v638, %v731
        %v764 = vsel %vm700, %v642, %v732
        %v765 = vsel %vm701, %v644, %v733
        %v766 = vsel %vm702, %v646, %v734
        %v767 = vsel %vm703, %v648, %v735
        %v768 = vpack.c.bf16 %v738, %v736
        %v769 = vpack.c.bf16 %v739, %v737
        %v770 = vpack.c.bf16 %v742, %v740
        %v771 = vpack.c.bf16 %v743, %v741
        %v772 = vpack.c.bf16 %v746, %v744
        %v773 = vpack.c.bf16 %v747, %v745
        %v774 = vpack.c.bf16 %v750, %v748
        %v775 = vpack.c.bf16 %v751, %v749
        %v776 = vpack.c.bf16 %v754, %v752
        %v777 = vpack.c.bf16 %v755, %v753
        %v778 = vpack.c.bf16 %v758, %v756
        %v779 = vpack.c.bf16 %v759, %v757
        %v780 = vpack.c.bf16 %v762, %v760
        %v781 = vpack.c.bf16 %v763, %v761
        %v782 = vpack.c.bf16 %v766, %v764
        %v783 = vpack.c.bf16 %v767, %v765
        %v800 = vunpack.c.l.b16 %v768
        %v801 = vunpack.c.l.b16 %v769
        %v802 = vunpack.c.h.b16 %v768
        %v803 = vunpack.c.h.b16 %v769
        %v804 = vunpack.c.l.b16 %v770
        %v805 = vunpack.c.l.b16 %v771
        %v806 = vunpack.c.h.b16 %v770
        %v807 = vunpack.c.h.b16 %v771
        %v808 = vunpack.c.l.b16 %v772
        %v809 = vunpack.c.l.b16 %v773
        %v810 = vunpack.c.h.b16 %v772
        %v811 = vunpack.c.h.b16 %v773
        %v812 = vunpack.c.l.b16 %v774
        %v813 = vunpack.c.l.b16 %v775
        %v814 = vunpack.c.h.b16 %v774
        %v815 = vunpack.c.h.b16 %v775
        %v816 = vunpack.c.l.b16 %v776
        %v817 = vunpack.c.l.b16 %v777
        %v818 = vunpack.c.h.b16 %v776
        %v819 = vunpack.c.h.b16 %v777
        %v820 = vunpack.c.l.b16 %v778
        %v821 = vunpack.c.l.b16 %v779
        %v822 = vunpack.c.h.b16 %v778
        %v823 = vunpack.c.h.b16 %v779
        %v824 = vunpack.c.l.b16 %v780
        %v825 = vunpack.c.l.b16 %v781
        %v826 = vunpack.c.h.b16 %v780
        %v827 = vunpack.c.h.b16 %v781
        %v828 = vunpack.c.l.b16 %v782
        %v829 = vunpack.c.l.b16 %v783
        %v830 = vunpack.c.h.b16 %v782
        %v831 = vunpack.c.h.b16 %v783
        %v832 = vpack.c.b16 %v801, %v800
        %v833 = vpack.c.b16 %v803, %v802
        %v834 = vpack.c.b16 %v805, %v804
        %v835 = vpack.c.b16 %v807, %v806
        %v836 = vpack.c.b16 %v809, %v808
        %v837 = vpack.c.b16 %v811, %v810
        %v838 = vpack.c.b16 %v813, %v812
        %v839 = vpack.c.b16 %v815, %v814
        %v840 = vpack.c.b16 %v817, %v816
        %v841 = vpack.c.b16 %v819, %v818
        %v842 = vpack.c.b16 %v821, %v820
        %v843 = vpack.c.b16 %v823, %v822
        %v844 = vpack.c.b16 %v825, %v824
        %v845 = vpack.c.b16 %v827, %v826
        %v846 = vpack.c.b16 %v829, %v828
        %v847 = vpack.c.b16 %v831, %v830
        %864 = vst [vmem:[#allocation2] sm:$0xff] %v832
        %865 = vst [vmem:[#allocation2 + $0x8] sm:$0xff] %v833
        %866 = vst [vmem:[#allocation2 + $0x10] sm:$0xff] %v834
        %867 = vst [vmem:[#allocation2 + $0x18] sm:$0xff] %v835
        %868 = vst [vmem:[#allocation2 + $0x20] sm:$0xff] %v836
        %869 = vst [vmem:[#allocation2 + $0x28] sm:$0xff] %v837
        %870 = vst [vmem:[#allocation2 + $0x30] sm:$0xff] %v838
        %871 = vst [vmem:[#allocation2 + $0x38] sm:$0xff] %v839
        %872 = vst [vmem:[#allocation2 + $0x40] sm:$0xff] %v840
        %873 = vst [vmem:[#allocation2 + $0x48] sm:$0xff] %v841
        %874 = vst [vmem:[#allocation2 + $0x50] sm:$0xff] %v842
        %875 = vst [vmem:[#allocation2 + $0x58] sm:$0xff] %v843
        %876 = vst [vmem:[#allocation2 + $0x60] sm:$0xff] %v844
        %877 = vst [vmem:[#allocation2 + $0x68] sm:$0xff] %v845
        %878 = vst [vmem:[#allocation2 + $0x70] sm:$0xff] %v846
        %879 = vst [vmem:[#allocation2 + $0x78] sm:$0xff] %v847
      $region37: #{tpu_custom_call.1} parent=31 // loop_footer
        %s196 = sadd.s32 1, %s192
      $region38: #{tpu_custom_call.1} parent=31 // loop_footer_branch
        %191 = sbr.rel target = $region34
      $region39: #{tpu_custom_call.1} parent=31 // loop_exit
        _
      %s880 = smul.u32 16, %s14
      %p881 = scmp.lt.s32.totalorder %s880, 47
      %s882 = scalar_select %p881, %s880, 47
      %s883 = smul.addr %s882, 8
      %s884 = scalar_lea.vmem %s3, %s883
      // Predicated region
      $region40: #{tpu_custom_call.1} parent=31 // pred_check
        %p885 = pneg %p100
      $region41: #{tpu_custom_call.1} parent=31 // pred_check_branch
        %887 = sbr.rel (%p885) target = $region43
      $region42: #{tpu_custom_call.1} parent=31 // pred_region
        %s888 = smul.u32 16, %s14
      $region43: #{tpu_custom_call.1} parent=31 // pred_fallthru
        _
    $region32: #{tpu_custom_call.1} parent=5 // pred_fallthru
      _
    %p889 = scmp.le.s32.totalorder 2, %s9
    // Predicated region
    $region44: #{tpu_custom_call.1} parent=5 // pred_check
      %p890 = pneg %p889
    $region45: #{tpu_custom_call.1} parent=5 // pred_check_branch
      %892 = sbr.rel (%p890) target = $region47
    $region46: #{tpu_custom_call.1} parent=5 // pred_region
      %s893 = ssub.s32 %s9, 2
      // Predicated region
      $region48: #{tpu_custom_call.1} parent=46 // pred_check
        %p894 = pneg %p106
      $region49: #{tpu_custom_call.1} parent=46 // pred_check_branch
        %896 = sbr.rel (%p894) target = $region51
      $region50: #{tpu_custom_call.1} parent=46 // pred_region
        %s897 = smul.u32 16, %s15
        %p898 = scmp.lt.s32.totalorder %s897, 47
        %s899 = scalar_select %p898, %s897, 47
        %s900 = smul.addr %s899, 8
        %s901 = scalar_lea.vmem %s3, %s900
      $region51: #{tpu_custom_call.1} parent=46 // pred_fallthru
        _
    $region47: #{tpu_custom_call.1} parent=5 // pred_fallthru
      _
  $region6: #{tpu_custom_call.1} parent=0 // loop_footer
    %s13 = sadd.s32 1, %s9
  $region7: #{tpu_custom_call.1} parent=0 // loop_footer_branch
    %8 = sbr.rel target = $region3
  $region8: #{tpu_custom_call.1} parent=0 // loop_exit
    _

</llo_original>
